<compile_context>
chip_gen: v7x
topology: tpu7x:2x2x1
jax: 0.10.0
libtpu: 0.0.40
codegen_flags: <defaults>
</compile_context>

<pallas_src>
import functools

import jax
import jax.numpy as jnp
from jax.experimental import pallas as pl
from jax.experimental.pallas import tpu as pltpu


# ---------------------------------------------------------------------------
# VMEM budgeting
# ---------------------------------------------------------------------------
_FALLBACK_VMEM_BYTES = 64 * 1024 * 1024  # conservative: v7x per-TensorCore VMEM


def _vmem_capacity_bytes():
    try:
        info = pltpu.get_tpu_info()
        cap = getattr(info, "vmem_capacity_bytes", None)
        if cap:
            return int(cap)
    except Exception:
        pass
    return _FALLBACK_VMEM_BYTES


# ---------------------------------------------------------------------------
# Kernels
# ---------------------------------------------------------------------------
def _se_fused_kernel(x_ref, wa_ref, wb_ref, o_ref, *, inv_hw, spatial_axis):
    """One batch element per grid step: pool + FC + rescale, fused (x read once).

    chw layout (spatial_axis=1): x block (C, HW), wa = w1^T (C, Cr), wb = w2 (C, Cr).
    hwc layout (spatial_axis=0): x block (HW, C), wa = w1 (Cr, C),  wb = w2^T (Cr, C).
    The tiny FCs stay off the MXU: broadcast-multiply + sublane/lane reductions.
    """
    ch_axis = 1 - spatial_axis

    # Global average pool; f32 accumulation, no f32 copy of x.
    pooled = jnp.sum(x_ref[0], axis=spatial_axis, keepdims=True,
                     dtype=jnp.float32) * inv_hw

    # FC1 + ReLU, FC2 + sigmoid (all f32, tiny).
    h = jnp.maximum(
        jnp.sum(wa_ref[...] * pooled, axis=ch_axis, keepdims=True), 0.0)
    s = jax.nn.sigmoid(
        jnp.sum(wb_ref[...] * h, axis=spatial_axis, keepdims=True))

    # Re-index x_ref here (do not hold the pooled load live across the FC
    # epilogue): re-reading VMEM is free, shorter vreg live ranges avoid spills.
    o_ref[0] = x_ref[0] * s.astype(o_ref.dtype)


def _se_pool_kernel(x_ref, ps_ref, *, spatial_axis, tile, hw, needs_mask):
    """Tiled pass 1: per-tile partial channel sums (fully parallel grid)."""
    x = x_ref[0]
    if needs_mask:  # static: only emitted when HW % tile != 0 (cdiv tiling)
        t = pl.program_id(1)
        idx = jax.lax.broadcasted_iota(jnp.int32, x.shape, spatial_axis)
        x = jnp.where(idx < hw - t * tile, x, jnp.zeros_like(x))
    ps_ref[0] = jnp.sum(x, axis=spatial_axis, keepdims=True, dtype=jnp.float32)


def _se_rescale_kernel(x_ref, s_ref, o_ref):
    """Tiled pass 2: channel-wise rescale (load -> vmul -> store)."""
    o_ref[0] = x_ref[0] * s_ref[0].astype(o_ref.dtype)


# ---------------------------------------------------------------------------
# Wrapper
# ---------------------------------------------------------------------------
def se_block(x_nchw, w1, w2, *, force_path=None, force_layout=None,
             hw_tile=None, donate_x=False):
    """SE block forward.

    x_nchw: (B, C, H, W); w1: (C//r, C); w2: (C, C//r)  (PyTorch Linear (out, in)).
    force_path: None | "fused" | "tiled";  force_layout: None | "chw" | "hwc".
    hw_tile: optional spatial tile for the tiled path (128-multiple for chw,
             8-multiple for hwc; cdiv-tiled, need not divide H*W).
    donate_x: alias the output onto x (only if the caller won't reuse x).
    """
    B, C, H, W = x_nchw.shape
    HW = H * W
    Cr = w1.shape[0]
    assert w1.shape == (Cr, C) and w2.shape == (C, Cr)

    dtype_bytes = jnp.dtype(x_nchw.dtype).itemsize
    w1f = w1.astype(jnp.float32)
    w2f = w2.astype(jnp.float32)

    # ---- layout selection: keep the lane axis dense -----------------------
    layout = force_layout
    if layout is None:
        layout = "chw" if (HW % 128 == 0 or C % 128 != 0) else "hwc"

    if layout == "chw":                       # (B, C, HW): HW on lanes
        x = x_nchw.reshape(B, C, HW)
        spatial_axis, gran = 1, 128
        x_block = lambda t: (1, C, t)
        x_idx = lambda b, t: (b, 0, t)
        wa, wb = jnp.transpose(w1f), w2f      # (C, Cr), (C, Cr)
    else:                                     # (B, HW, C): C on lanes
        x = jnp.transpose(x_nchw.reshape(B, C, HW), (0, 2, 1))
        spatial_axis, gran = 0, 8
        x_block = lambda t: (1, t, C)
        x_idx = lambda b, t: (b, t, 0)
        wa, wb = w1f, jnp.transpose(w2f)      # (Cr, C), (Cr, C)

    # ---- VMEM budget -------------------------------------------------------
    cap = _vmem_capacity_bytes()
    vmem_limit = int(cap * 0.90)              # explicit scoped-VMEM limit
    block_budget = int(cap * 0.85)            # fused path = 1 in + 1 out stream

    weights_bytes = 2 * 2 * C * Cr * 4        # both weights, double-buffered, f32
    fused_bytes = 4 * C * HW * dtype_bytes + weights_bytes  # 2x in + 2x out + w

    use_fused = fused_bytes <= block_budget
    if force_path == "fused":
        use_fused = True
    elif force_path == "tiled":
        use_fused = False

    io_alias = {0: 0} if donate_x else {}
    out_shape3 = jax.ShapeDtypeStruct(x.shape, x.dtype)

    if use_fused:
        # TODO(synk): grid=(B,) uses one TensorCore per batch element; for B=1
        # on v7x the tiled path below is the two-core alternative.
        out = pl.pallas_call(
            functools.partial(_se_fused_kernel, inv_hw=1.0 / HW,
                              spatial_axis=spatial_axis),
            out_shape=out_shape3,
            grid_spec=pltpu.PrefetchScalarGridSpec(
                num_scalar_prefetch=0,
                grid=(B,),
                in_specs=[
                    pl.BlockSpec(x_block(HW), lambda b: (b, 0, 0)),
                    pl.BlockSpec(wa.shape, lambda b: (0, 0)),
                    pl.BlockSpec(wb.shape, lambda b: (0, 0)),
                ],
                out_specs=pl.BlockSpec(x_block(HW), lambda b: (b, 0, 0)),
            ),
            compiler_params=pltpu.CompilerParams(
                dimension_semantics=("parallel",),
                vmem_limit_bytes=vmem_limit),
            input_output_aliases=io_alias,
        )(x, wa, wb)
    else:
        # ---- tiled two-phase path (x read twice; FC hoisted to XLA) -------
        tile = hw_tile if hw_tile is not None else block_budget // (4 * C * dtype_bytes)
        tile = max(gran, (tile // gran) * gran)
        if tile >= HW:
            tile = HW                          # full-dim block is always legal
        n_t = pl.cdiv(HW, tile)
        needs_mask = (HW % tile) != 0

        if layout == "chw":
            ps_shape, ps_block = (B * n_t, C, 1), (1, C, 1)
        else:
            ps_shape, ps_block = (B * n_t, 1, C), (1, 1, C)

        # Pass 1: per-tile partial channel sums; fully parallel (megacore-safe
        # even for B == 1 on v7x); no weights / no scratch in-kernel.
        partial = pl.pallas_call(
            functools.partial(_se_pool_kernel, spatial_axis=spatial_axis,
                              tile=tile, hw=HW, needs_mask=needs_mask),
            out_shape=jax.ShapeDtypeStruct(ps_shape, jnp.float32),
            grid_spec=pltpu.PrefetchScalarGridSpec(
                num_scalar_prefetch=0,
                grid=(B, n_t),
                in_specs=[pl.BlockSpec(x_block(tile), x_idx)],
                out_specs=pl.BlockSpec(ps_block,
                                       lambda b, t: (b * n_t + t, 0, 0)),
            ),
            compiler_params=pltpu.CompilerParams(
                dimension_semantics=("parallel", "parallel"),
                vmem_limit_bytes=vmem_limit),
        )(x)

        # Tiny FC (ReLU / sigmoid) in plain XLA: ~zero FLOPs, its only in-kernel
        # cost was VMEM residency and epilogue complexity.
        pooled = partial.reshape(B, n_t, C).sum(axis=1) * (1.0 / HW)   # (B, C)
        h = jnp.maximum(pooled @ w1f.T, 0.0)                           # (B, Cr)
        scl = jax.nn.sigmoid(h @ w2f.T)                                # (B, C)
        if layout == "chw":
            scl3, s_block = scl[:, :, None], (1, C, 1)                 # (B, C, 1)
        else:
            scl3, s_block = scl[:, None, :], (1, 1, C)                 # (B, 1, C)

        # Pass 2: lane-dense load -> vmul -> store rescale; partial last tile
        # writes through (out-of-bounds lanes/sublanes are dropped).
        out = pl.pallas_call(
            _se_rescale_kernel,
            out_shape=out_shape3,
            grid_spec=pltpu.PrefetchScalarGridSpec(
                num_scalar_prefetch=0,
                grid=(B, n_t),
                in_specs=[
                    pl.BlockSpec(x_block(tile), x_idx),
                    pl.BlockSpec(s_block, lambda b, t: (b, 0, 0)),
                ],
                out_specs=pl.BlockSpec(x_block(tile), x_idx),
            ),
            compiler_params=pltpu.CompilerParams(
                dimension_semantics=("parallel", "parallel"),
                vmem_limit_bytes=vmem_limit),
            input_output_aliases=io_alias,
        )(x, scl3)

    if layout == "hwc":
        out = jnp.transpose(out, (0, 2, 1))
    return out.reshape(B, C, H, W)


def se_block_ref(x_nchw, w1, w2):
    """Plain-JAX reference matching the PyTorch forward (bias-free Linears)."""
    y = jnp.mean(x_nchw, axis=(2, 3))                      # (B, C)
    y = jnp.maximum(y @ w1.T, 0.0)                         # (B, C//r)
    y = jax.nn.sigmoid(y @ w2.T)                           # (B, C)
    return x_nchw * y[:, :, None, None]


if __name__ == "__main__":
    key = jax.random.PRNGKey(0)

    def run_case(B, C, H, W, reduction_ratio=2, **kw):
        hidden = max(1, C // reduction_ratio)
        kx, k1, k2 = jax.random.split(jax.random.fold_in(key, C * H + W), 3)
        x = jax.random.normal(kx, (B, C, H, W), dtype=jnp.float32)
        # PyTorch Linear convention (out, in); both Linears are bias-free.
        w1 = jax.random.normal(k1, (hidden, C), dtype=jnp.float32) * 0.5
        w2 = jax.random.normal(k2, (C, hidden), dtype=jnp.float32) * 0.5
        ref = se_block_ref(x, w1, w2)
        out = jax.block_until_ready(se_block(x, w1, w2, **kw))
        assert out.shape == (B, C, H, W)
        assert jnp.allclose(out, ref, atol=1e-5, rtol=1e-4), (B, C, H, W, kw)

    # Main small shape: fused chw path (HW = 256, lane-dense).
    run_case(2, 4, 16, 16)
    # Tiled chw path, exact 128-lane tiles (pool pass + XLA FC + rescale pass).
    run_case(2, 4, 16, 16, force_path="tiled", hw_tile=128)
    # Tiled chw path with a masked partial last tile (HW = 144, cdiv tiling).
    run_case(2, 4, 12, 12, force_path="tiled", hw_tile=128)
    # Channels-last (hwc) fused path: C % 128 == 0, HW = 9 (late-stage SE shape).
    run_case(2, 128, 3, 3)
    # Channels-last tiled path with a masked partial last tile (HW = 25).
    run_case(2, 128, 5, 5, force_path="tiled", hw_tile=8)

    print("KERNEL_OK")
</pallas_src>

<mosaic_0001>
module attributes {stable_mosaic.version = 11 : i64} {
  func.func @_se_fused_kernel(%arg0: i32, %arg1: memref<1x4x256xf32, #tpu.memory_space<vmem>>, %arg2: memref<4x2xf32, #tpu.memory_space<vmem>>, %arg3: memref<4x2xf32, #tpu.memory_space<vmem>>, %arg4: memref<1x4x256xf32, #tpu.memory_space<vmem>>) attributes {dimension_semantics = [#tpu.dimension_semantics<parallel>], iteration_bounds = array<i64: 2>, scalar_prefetch = 0 : i64, scratch_operands = 0 : i64, tpu.core_type = #tpu.core_type<tc>, window_params = [{transform_indices = @transform_0, window_bounds = array<i64: 1, 4, 256>}, {pipeline_mode = #tpu.pipeline_mode<synchronous>, transform_indices = @transform_1, window_bounds = array<i64: 4, 2>}, {pipeline_mode = #tpu.pipeline_mode<synchronous>, transform_indices = @transform_2, window_bounds = array<i64: 4, 2>}, {transform_indices = @transform_3, window_bounds = array<i64: 1, 4, 256>}]} {
    %c0 = arith.constant 0 : index
    %c0_0 = arith.constant 0 : index
    %c0_1 = arith.constant 0 : index
    %0 = vector.load %arg1[%c0, %c0_0, %c0_1] : memref<1x4x256xf32, #tpu.memory_space<vmem>>, vector<1x4x256xf32>
    %1 = vector.shape_cast %0 : vector<1x4x256xf32> to vector<4x256xf32>
    %cst = arith.constant dense<0.000000e+00> : vector<4xf32>
    %2 = vector.multi_reduction <add>, %1, %cst [1] : vector<4x256xf32> to vector<4xf32>
    %3 = vector.shape_cast %2 : vector<4xf32> to vector<4x1xf32>
    %cst_2 = arith.constant 3.906250e-03 : f32
    %4 = vector.broadcast %cst_2 : f32 to vector<4x1xf32>
    %5 = arith.mulf %3, %4 : vector<4x1xf32>
    %c0_3 = arith.constant 0 : index
    %c0_4 = arith.constant 0 : index
    %6 = vector.load %arg2[%c0_3, %c0_4] : memref<4x2xf32, #tpu.memory_space<vmem>>, vector<4x2xf32>
    %7 = vector.broadcast %5 : vector<4x1xf32> to vector<4x2xf32>
    %8 = arith.mulf %6, %7 : vector<4x2xf32>
    %cst_5 = arith.constant dense<0.000000e+00> : vector<2xf32>
    %9 = vector.multi_reduction <add>, %8, %cst_5 [0] : vector<4x2xf32> to vector<2xf32>
    %10 = vector.shape_cast %9 : vector<2xf32> to vector<1x2xf32>
    %cst_6 = arith.constant 0.000000e+00 : f32
    %11 = vector.broadcast %cst_6 : f32 to vector<1x2xf32>
    %12 = arith.maximumf %10, %11 : vector<1x2xf32>
    %c0_7 = arith.constant 0 : index
    %c0_8 = arith.constant 0 : index
    %13 = vector.load %arg3[%c0_7, %c0_8] : memref<4x2xf32, #tpu.memory_space<vmem>>, vector<4x2xf32>
    %14 = vector.broadcast %12 : vector<1x2xf32> to vector<4x2xf32>
    %15 = arith.mulf %13, %14 : vector<4x2xf32>
    %cst_9 = arith.constant dense<0.000000e+00> : vector<4xf32>
    %16 = vector.multi_reduction <add>, %15, %cst_9 [1] : vector<4x2xf32> to vector<4xf32>
    %17 = vector.shape_cast %16 : vector<4xf32> to vector<4x1xf32>
    %18 = arith.negf %17 : vector<4x1xf32>
    %19 = math.exp %18 : vector<4x1xf32>
    %cst_10 = arith.constant 1.000000e+00 : f32
    %20 = vector.broadcast %cst_10 : f32 to vector<4x1xf32>
    %21 = arith.addf %20, %19 : vector<4x1xf32>
    %22 = arith.divf %20, %21 : vector<4x1xf32>
    %c0_11 = arith.constant 0 : index
    %c0_12 = arith.constant 0 : index
    %c0_13 = arith.constant 0 : index
    %23 = vector.load %arg1[%c0_11, %c0_12, %c0_13] : memref<1x4x256xf32, #tpu.memory_space<vmem>>, vector<1x4x256xf32>
    %24 = vector.shape_cast %23 : vector<1x4x256xf32> to vector<4x256xf32>
    %25 = vector.broadcast %22 : vector<4x1xf32> to vector<4x256xf32>
    %26 = arith.mulf %24, %25 : vector<4x256xf32>
    %c0_14 = arith.constant 0 : index
    %c0_15 = arith.constant 0 : index
    %c0_16 = arith.constant 0 : index
    %27 = vector.load %arg4[%c0_14, %c0_15, %c0_16] : memref<1x4x256xf32, #tpu.memory_space<vmem>>, vector<1x4x256xf32>
    %28 = vector.shape_cast %27 : vector<1x4x256xf32> to vector<4x256xf32>
    %29 = vector.shape_cast %26 : vector<4x256xf32> to vector<1x4x256xf32>
    tpu.vector_store %arg4[%c0_14, %c0_15, %c0_16], %29 {strides = array<i32>} : memref<1x4x256xf32, #tpu.memory_space<vmem>>, vector<1x4x256xf32>,
    return
  }
  func.func @transform_0(%arg0: i32) -> (i32, i32, i32) {
    %c0_i32 = arith.constant 0 : i32
    %c0_i32_0 = arith.constant 0 : i32
    %c0_i32_1 = arith.constant 0 : i32
    return %arg0, %c0_i32, %c0_i32_0 : i32, i32, i32
  }
  func.func @transform_1(%arg0: i32) -> (i32, i32) {
    %c0_i32 = arith.constant 0 : i32
    %c0_i32_0 = arith.constant 0 : i32
    %c0_i32_1 = arith.constant 0 : i32
    return %c0_i32, %c0_i32_0 : i32, i32
  }
  func.func @transform_2(%arg0: i32) -> (i32, i32) {
    %c0_i32 = arith.constant 0 : i32
    %c0_i32_0 = arith.constant 0 : i32
    %c0_i32_1 = arith.constant 0 : i32
    return %c0_i32, %c0_i32_0 : i32, i32
  }
  func.func @transform_3(%arg0: i32) -> (i32, i32, i32) {
    %c0_i32 = arith.constant 0 : i32
    %c0_i32_0 = arith.constant 0 : i32
    %c0_i32_1 = arith.constant 0 : i32
    return %arg0, %c0_i32, %c0_i32_0 : i32, i32, i32
  }
}

</mosaic_0001>

<llo_original>
// kernel: tpu_custom_call.1
$region0: #{tpu_custom_call.1}
  #allocation0 [shape = 'u32[]', space=smem, size = 0x4, offset = 0x4, fixed_abs, tag = 'smem constant byte address 0x4 - core index']
  #allocation1 [shape = 'u32[144,128]{1,0:T(1,128)}', space=vmem, size = 0x12000, scoped, tag = 'internal scratch']
  %s0 = inlined_call_operand.hbm [shape: f32[2,4,256], index: 0, kind: input, shape index: {}]
  %s1 = inlined_call_operand.vmem [shape: f32[4,2], index: 1, kind: input, shape index: {}]
  %s2 = inlined_call_operand.vmem [shape: f32[4,2], index: 2, kind: input, shape index: {}]
  %s3 = inlined_call_operand.hbm [shape: f32[2,4,256], index: 3, kind: output, shape index: {}]
  %s4 = sld [smem:[#allocation0]]
  $region49: #{tpu_custom_call.1} parent=0
    _
  %s6 = ssub.s32 1, %s4
  %s7 = scalar_select 0, %s6, %s4
  $region1: #{tpu_custom_call.1} parent=0
    #allocation2 [shape = 'u8[8192]{0}', space=vmem, size = 0x2000, scoped, tag = 'input window, operand 0']
    #allocation3 [shape = 's32[2]{0}', space=sflag, size = 0x8, scoped, tag = 'scoped memory for tpu_custom_call.1']
    #allocation4 [shape = 's32[2]{0}', space=sflag, size = 0x8, scoped, tag = 'scoped memory for tpu_custom_call.1']
    #allocation5 [shape = 'u8[8192]{0}', space=vmem, size = 0x2000, scoped, tag = 'output window, operand 0']
    %8 = vsyncpa [#allocation3], 0
    %s9 = scalar_lea.sflag [#allocation3], 1
    %10 = vsyncpa %s9, 0
    %11 = vsyncpa [#allocation4], 0
    %s12 = scalar_lea.sflag [#allocation4], 1
    %13 = vsyncpa %s12, 0
    loop: start=0, step=1, limit=4
    $region2: #{tpu_custom_call.1} parent=1 // loop_pre_header
      _
    $region3: #{tpu_custom_call.1} parent=1 // loop_header
      %s15 = sphi 0, %s19
      %p16 = scmp.ge.s32.totalorder %s15, 4
      %s25 = sphi 0, %s27
      %s28 = sphi 0, %s25
      %s29 = sphi 0, %s28
      %s45 = sphi 0, %s29
      %s49 = sphi 0, %s49
      %s51 = sphi 0, %s49
      %s52 = sphi 0, %s51
      %s66 = sphi 0, %s52
      %s70 = sphi 0, %s70
      %s72 = sphi 0, %s70
      %s73 = sphi 0, %s72
      %s87 = sphi 0, %s73
      %s93 = sphi 0, %s95
      %s96 = sphi 0, %s93
      %s97 = sphi 0, %s96
      %s113 = sphi 0, %s97
    $region4: #{tpu_custom_call.1} parent=1 // loop_header_branch
      %18 = sbr.rel (%p16) target = $region8
    $region5: #{tpu_custom_call.1} parent=1 // loop_body
      %s20 = ssub.s32 %s15, 1
      %s21 = ssub.s32 %s15, 2
      %s22 = sadd.s32 %s15, 1
      %s23 = ssub.s32 %s15, %s22
      %p24 = scmp.eq.s32.totalorder %s23, 0
      %s26 = sadd.s32 %s25, 1
      %s27 = scalar_select %p24, %s25, %s26
      %p30 = pneg %p24
      %p31 = scmp.eq.s32.totalorder %s15, 1
      %p32 = por %p30, %p31
      %p33 = scmp.ne.s32.totalorder %s25, %s28
      %p34 = scmp.eq.s32.totalorder %s15, 0
      %p35 = por %p33, %p34
      %p36 = scmp.ne.s32.totalorder %s25, %s28
      %p37 = scmp.eq.s32.totalorder %s20, 1
      %p38 = por %p36, %p37
      %p39 = scmp.ne.s32.totalorder %s28, %s29
      %p40 = scmp.eq.s32.totalorder %s20, 0
      %p41 = por %p39, %p40
      %p42 = scmp.ne.s32.totalorder %s28, %s29
      %p43 = scmp.eq.s32.totalorder %s21, 1
      %p44 = por %p42, %p43
      %p46 = scmp.ne.s32.totalorder %s29, %s45
      %p47 = scmp.eq.s32.totalorder %s21, 0
      %p48 = por %p46, %p47
      %s50 = sadd.s32 %s49, 1
      %p53 = scmp.eq.s32.totalorder %s15, 1
      %p54 = scmp.ne.s32.totalorder %s49, %s51
      %p55 = scmp.eq.s32.totalorder %s15, 0
      %p56 = por %p54, %p55
      %p57 = scmp.ne.s32.totalorder %s49, %s51
      %p58 = scmp.eq.s32.totalorder %s20, 1
      %p59 = por %p57, %p58
      %p60 = scmp.ne.s32.totalorder %s51, %s52
      %p61 = scmp.eq.s32.totalorder %s20, 0
      %p62 = por %p60, %p61
      %p63 = scmp.ne.s32.totalorder %s51, %s52
      %p64 = scmp.eq.s32.totalorder %s21, 1
      %p65 = por %p63, %p64
      %p67 = scmp.ne.s32.totalorder %s52, %s66
      %p68 = scmp.eq.s32.totalorder %s21, 0
      %p69 = por %p67, %p68
      %s71 = sadd.s32 %s70, 1
      %p74 = scmp.eq.s32.totalorder %s15, 1
      %p75 = scmp.ne.s32.totalorder %s70, %s72
      %p76 = scmp.eq.s32.totalorder %s15, 0
      %p77 = por %p75, %p76
      %p78 = scmp.ne.s32.totalorder %s70, %s72
      %p79 = scmp.eq.s32.totalorder %s20, 1
      %p80 = por %p78, %p79
      %p81 = scmp.ne.s32.totalorder %s72, %s73
      %p82 = scmp.eq.s32.totalorder %s20, 0
      %p83 = por %p81, %p82
      %p84 = scmp.ne.s32.totalorder %s72, %s73
      %p85 = scmp.eq.s32.totalorder %s21, 1
      %p86 = por %p84, %p85
      %p88 = scmp.ne.s32.totalorder %s73, %s87
      %p89 = scmp.eq.s32.totalorder %s21, 0
      %p90 = por %p88, %p89
      %s91 = ssub.s32 %s15, %s22
      %p92 = scmp.eq.s32.totalorder %s91, 0
      %s94 = sadd.s32 %s93, 1
      %s95 = scalar_select %p92, %s93, %s94
      %p98 = pneg %p92
      %p99 = scmp.eq.s32.totalorder %s15, 1
      %p100 = por %p98, %p99
      %p101 = scmp.ne.s32.totalorder %s93, %s96
      %p102 = scmp.eq.s32.totalorder %s15, 0
      %p103 = por %p101, %p102
      %p104 = scmp.ne.s32.totalorder %s93, %s96
      %p105 = scmp.eq.s32.totalorder %s20, 1
      %p106 = por %p104, %p105
      %p107 = scmp.ne.s32.totalorder %s96, %s97
      %p108 = scmp.eq.s32.totalorder %s20, 0
      %p109 = por %p107, %p108
      %p110 = scmp.ne.s32.totalorder %s96, %s97
      %p111 = scmp.eq.s32.totalorder %s21, 1
      %p112 = por %p110, %p111
      %p114 = scmp.ne.s32.totalorder %s97, %s113
      %p115 = scmp.eq.s32.totalorder %s21, 0
      %p116 = por %p114, %p115
      %p117 = scmp.le.s32.totalorder 1, %s15
      %p118 = scmp.lt.s32.totalorder %s15, 3
      %p119 = pnand %p117, %p118
      %p120 = pneg %p119
      // Predicated region
      $region9: #{tpu_custom_call.1} parent=5 // pred_check
        _
      $region10: #{tpu_custom_call.1} parent=5 // pred_check_branch
        %122 = sbr.rel (%p119) target = $region12
      $region11: #{tpu_custom_call.1} parent=5 // pred_region
        %s123 = ssub.s32 %s15, 1
        // Predicated region
        $region13: #{tpu_custom_call.1} parent=11 // pred_check
          %p124 = pneg %p62
        $region14: #{tpu_custom_call.1} parent=11 // pred_check_branch
          %126 = sbr.rel (%p124) target = $region16
        $region15: #{tpu_custom_call.1} parent=11 // pred_region
          _
        $region16: #{tpu_custom_call.1} parent=11 // pred_fallthru
          _
        // Predicated region
        $region17: #{tpu_custom_call.1} parent=11 // pred_check
          %p127 = pneg %p83
        $region18: #{tpu_custom_call.1} parent=11 // pred_check_branch
          %129 = sbr.rel (%p127) target = $region20
        $region19: #{tpu_custom_call.1} parent=11 // pred_region
          _
        $region20: #{tpu_custom_call.1} parent=11 // pred_fallthru
          _
      $region12: #{tpu_custom_call.1} parent=5 // pred_fallthru
        _
      %p130 = scmp.lt.s32.totalorder %s15, 2
      // Predicated region
      $region21: #{tpu_custom_call.1} parent=5 // pred_check
        %p131 = pneg %p130
      $region22: #{tpu_custom_call.1} parent=5 // pred_check_branch
        %133 = sbr.rel (%p131) target = $region24
      $region23: #{tpu_custom_call.1} parent=5 // pred_region
        // Predicated region
        $region25: #{tpu_custom_call.1} parent=23 // pred_check
          %p134 = pneg %p35
        $region26: #{tpu_custom_call.1} parent=23 // pred_check_branch
          %136 = sbr.rel (%p134) target = $region28
        $region27: #{tpu_custom_call.1} parent=23 // pred_region
          %s137 = sand.u32 %s25, 1
          %s138 = scalar_lea.sflag [#allocation3], %s137
          %s139 = sand.u32 %s25, 1
          %s140 = smul.addr %s139, 8
          %s141 = scalar_lea.vmem [#allocation2], %s140
          %s143 = ssub.s32 128, 128
          %144 = vsyncadd %s138, %s143
          %s145 = smul.addr %s15, 2
          %s146 = smul.addr %s145, 64
          %s147 = scalar_lea.hbm %s0, %s146
          %s149 = sshll.u32 %s141, 4
          %s150 = int_to_ptr.vmem [resolvable:$true] %s149
          %152 = dma.hbm_to_vmem [thread:$0]  %s147, 128, %s150, %s138
        $region28: #{tpu_custom_call.1} parent=23 // pred_fallthru
          _
      $region24: #{tpu_custom_call.1} parent=5 // pred_fallthru
        _
      %p153 = scmp.le.s32.totalorder 1, %s15
      %p154 = scmp.lt.s32.totalorder %s15, 3
      %p155 = pnand %p153, %p154
      %p156 = pneg %p155
      // Predicated region
      $region29: #{tpu_custom_call.1} parent=5 // pred_check
        _
      $region30: #{tpu_custom_call.1} parent=5 // pred_check_branch
        %158 = sbr.rel (%p155) target = $region32
      $region31: #{tpu_custom_call.1} parent=5 // pred_region
        %s159 = ssub.s32 %s15, 1
        %s160 = sand.u32 %s28, 1
        %s161 = scalar_lea.sflag [#allocation3], %s160
        %s162 = sand.u32 %s28, 1
        %s163 = smul.addr %s162, 8
        %s164 = scalar_lea.vmem [#allocation2], %s163
        // Predicated region
        $region33: #{tpu_custom_call.1} parent=31 // pred_check
          %p165 = pneg %p41
        $region34: #{tpu_custom_call.1} parent=31 // pred_check_branch
          %167 = sbr.rel (%p165) target = $region36
        $region35: #{tpu_custom_call.1} parent=31 // pred_region
          %168 = dma.done %s161, 128
        $region36: #{tpu_custom_call.1} parent=31 // pred_fallthru
          _
        %s169 = sand.u32 %s28, 1
        %s170 = scalar_lea.sflag [#allocation3], %s169
        %s171 = sand.u32 %s28, 1
        %s172 = smul.addr %s171, 8
        %s173 = scalar_lea.vmem [#allocation2], %s172
        %p174 = pneg %p41
        %p175 = pneg %p38
        %p176 = pneg %p62
        %p177 = pneg %p59
        %p178 = pneg %p83
        %p179 = pneg %p80
        %p180 = pneg %p109
        %p181 = pneg %p106
        %s182 = sand.u32 %s96, 1
        %s183 = scalar_lea.sflag [#allocation4], %s182
        %s184 = sand.u32 %s96, 1
        %s185 = smul.addr %s184, 8
        %s186 = scalar_lea.vmem [#allocation5], %s185
        %v187 = vld [vmem:[%s164] sm:$0xff]
        %v189 = vcombine.high %v187, %v187
        %vm191 = vcmask 1043456
        %v192 = vsel %vm191, %v187, 0.0
        %v193 = vsel %vm191, %v189, 0.0
        %v194 = vadd.f32 %v192, %v193
        %195 = vadd.xlane.f32.xlu0 %v194
        %v196 = vpop.xlane.xlu0 %195
        %v197 = vmul.f32 %v196, 0.00390625
        %v198 = vld [vmem:[%s1] sm:$0xf]
        %v199 = vmul.f32 %v198, %v197
        %vm200 = vcmask 11264
        %v201 = vsel %vm200, %v199, 0.0
        %v202 = vrot.slane %v201, 4
        %v203 = vadd.f32 %v201, %v202
        %v204 = vrot.slane %v203, 2
        %v205 = vadd.f32 %v203, %v204
        %v206 = vrot.slane %v205, 1
        %v207 = vadd.f32 %v205, %v206
        %v208 = vmax.f32 %v207, 0.0
        %v209 = vld [vmem:[%s2] sm:$0xf]
        %v210 = vmul.f32 %v209, %v208
        %v211 = vsel %vm200, %v210, 0.0
        %212 = vadd.xlane.f32.xlu0 %v211
        %v213 = vpop.xlane.xlu0 %212
        %v214 = vxor.u32 %v213, 2147483648
        %v215 = vmul.f32 %v214, 1.442695
        %v216 = vpow.pop %v215
        %v217 = vadd.f32 %v216, 1.0
        %v218 = vrcp.pop %v217
        %v219 = vmul.f32 1.0, %v218
        %v222 = vunpack.c.l.s4 839922192
        %v223 = vunpack.c.0.s8 %v222
        %v224 = vlaneseq
        %v225 = vshrl.u32 %v224, 7
        %v226 = vsub.s32 %v223, %v225
        %v227 = vrot.slane %v219, %v226
        %v229 = vmul.f32 %v187, %v227
        %230 = vst [vmem:[%s186] sm:$0xff] %v229
        %s231 = sand.u32 %s96, 1
        %s232 = scalar_lea.sflag [#allocation4], %s231
        %s233 = sand.u32 %s96, 1
        %s234 = smul.addr %s233, 8
        %s235 = scalar_lea.vmem [#allocation5], %s234
        // Predicated region
        $region37: #{tpu_custom_call.1} parent=31 // pred_check
          %p236 = pneg %p106
        $region38: #{tpu_custom_call.1} parent=31 // pred_check_branch
          %238 = sbr.rel (%p236) target = $region40
        $region39: #{tpu_custom_call.1} parent=31 // pred_region
          %s240 = ssub.s32 128, 128
          %241 = vsyncadd %s232, %s240
          %s242 = smul.addr %s20, 2
          %s243 = smul.addr %s242, 64
          %s244 = scalar_lea.hbm %s3, %s243
          %s246 = sshll.u32 %s235, 4
          %s247 = int_to_ptr.vmem [resolvable:$true] %s246
          %249 = dma.vmem_to_hbm [thread:$0]  %s247, 128, %s244, %s232
        $region40: #{tpu_custom_call.1} parent=31 // pred_fallthru
          _
      $region32: #{tpu_custom_call.1} parent=5 // pred_fallthru
        _
      %p250 = scmp.le.s32.totalorder 2, %s15
      // Predicated region
      $region41: #{tpu_custom_call.1} parent=5 // pred_check
        %p251 = pneg %p250
      $region42: #{tpu_custom_call.1} parent=5 // pred_check_branch
        %253 = sbr.rel (%p251) target = $region44
      $region43: #{tpu_custom_call.1} parent=5 // pred_region
        %s254 = ssub.s32 %s15, 2
        // Predicated region
        $region45: #{tpu_custom_call.1} parent=43 // pred_check
          %p255 = pneg %p112
        $region46: #{tpu_custom_call.1} parent=43 // pred_check_branch
          %257 = sbr.rel (%p255) target = $region48
        $region47: #{tpu_custom_call.1} parent=43 // pred_region
          %s258 = sand.u32 %s97, 1
          %s259 = scalar_lea.sflag [#allocation4], %s258
          %s260 = sand.u32 %s97, 1
          %s261 = smul.addr %s260, 8
          %s262 = scalar_lea.vmem [#allocation5], %s261
          %263 = dma.done %s259, 128
        $region48: #{tpu_custom_call.1} parent=43 // pred_fallthru
          _
      $region44: #{tpu_custom_call.1} parent=5 // pred_fallthru
        _
    $region6: #{tpu_custom_call.1} parent=1 // loop_footer
      %s19 = sadd.s32 1, %s15
    $region7: #{tpu_custom_call.1} parent=1 // loop_footer_branch
      %14 = sbr.rel target = $region3
    $region8: #{tpu_custom_call.1} parent=1 // loop_exit
      _
    %264 = vsyncpa [#allocation3], 1
    %s265 = scalar_lea.sflag [#allocation3], 1
    %266 = vsyncpa %s265, 1
    %267 = vsyncpa [#allocation4], 1
    %s268 = scalar_lea.sflag [#allocation4], 1
    %269 = vsyncpa %s268, 1

</llo_original>
